<compile_context>
chip_gen: v6e
topology: v6e:2x2x1
jax: 0.10.0
libtpu: 0.0.40
codegen_flags: <defaults>
</compile_context>

<pallas_src>
import jax
import jax.numpy as jnp
from jax.experimental import pallas as pl
from jax.experimental.pallas import tpu as pltpu


def correlation_penalty_loss(x, *, tile_n=None):
    """x: (N, D) float array. Returns scalar float32 loss."""
    n, d = x.shape
    itemsize = jnp.dtype(x.dtype).itemsize
    sub = 16 if itemsize < 4 else 8            # sublane packing (bf16 packs 2 rows)
    gram_bytes = d * d * 4

    if tile_n is None:
        # Budget the double-buffered input blocks against a ~24 MiB working set
        # (safe inside v5e/v6e scoped VMEM once raised, and v7x's 64 MiB physical),
        # after reserving the resident (D, D) f32 Gram accumulator.
        budget = 24 * 1024 * 1024
        avail = budget - gram_bytes - 2 * d * 4
        per_row = 2 * d * itemsize             # double-buffered input rows
        tile_n = max(sub, avail // per_row) if avail > 0 else sub
        tile_n = min(int(tile_n), 8192)

    if tile_n >= n:
        tile_n = n                              # single block == full array
    else:
        tile_n = max(sub, (int(tile_n) // sub) * sub)   # sublane-aligned blocks

    num_tiles = pl.cdiv(n, tile_n)
    needs_mask = (n % tile_n) != 0
    mxu_dtype = jnp.bfloat16 if x.dtype == jnp.bfloat16 else jnp.float32
    inv_n = float(1.0 / n)                      # Python float -> jaxpr literal

    def kernel(x_ref, o_ref, colsum_ref, gram_ref):
        i = pl.program_id(0)
        nt = pl.num_programs(0)

        @pl.when(i == 0)
        def _init():
            colsum_ref[...] = jnp.zeros_like(colsum_ref)
            gram_ref[...] = jnp.zeros_like(gram_ref)

        def accumulate(masked):
            xf = x_ref[...].astype(jnp.float32)
            if masked:
                row = jax.lax.broadcasted_iota(jnp.int32, xf.shape, 0)
                xf = jnp.where(i * tile_n + row < n, xf, 0.0)
            colsum_ref[...] += jnp.sum(xf, axis=0, keepdims=True)
            zz = xf.astype(mxu_dtype)
            # G += x^T x: contract axis 0 of both operands (no explicit transpose).
            gram_ref[...] += jax.lax.dot_general(
                zz, zz, (((0,), (0,)), ((), ())),
                preferred_element_type=jnp.float32)

        if needs_mask:
            @pl.when(i == nt - 1)
            def _tail():
                accumulate(True)

            @pl.when(i != nt - 1)
            def _full():
                accumulate(False)
        else:
            accumulate(False)

        @pl.when(i == nt - 1)
        def _finalize():
            s = colsum_ref[...]                                   # (1, D)
            # rank-1 mean correction: cor = G - (s^T s) / N
            outer = jax.lax.dot_general(
                s, s, (((0,), (0,)), ((), ())),
                preferred_element_type=jnp.float32)               # (D, D)
            cor = gram_ref[...] - outer * inv_n
            r = jax.lax.broadcasted_iota(jnp.int32, cor.shape, 0)
            c = jax.lax.broadcasted_iota(jnp.int32, cor.shape, 1)
            no_diag = jnp.where(r == c, 0.0, cor)
            ssq = jnp.sum(no_diag * no_diag)
            o_ref[...] = (jnp.sqrt(ssq) * inv_n).reshape(1, 1)

    grid_spec = pltpu.PrefetchScalarGridSpec(
        num_scalar_prefetch=0,
        grid=(num_tiles,),
        in_specs=[pl.BlockSpec((tile_n, d), lambda i: (i, 0))],
        out_specs=pl.BlockSpec((1, 1), lambda i: (0, 0)),
        scratch_shapes=[
            pltpu.VMEM((1, d), jnp.float32),    # column sums of x
            pltpu.VMEM((d, d), jnp.float32),    # uncentered Gram accumulator
        ],
    )

    vmem_limit = gram_bytes + 4 * tile_n * d * itemsize + (8 << 20)
    vmem_limit = int(min(max(vmem_limit, 16 << 20), 48 << 20))

    out = pl.pallas_call(
        kernel,
        out_shape=jax.ShapeDtypeStruct((1, 1), jnp.float32),
        grid_spec=grid_spec,
        compiler_params=pltpu.CompilerParams(
            dimension_semantics=("arbitrary",),
            vmem_limit_bytes=vmem_limit),
    )(x)
    return out[0, 0]


def _reference(x):
    x = x.astype(jnp.float32)
    mean = jnp.mean(x, axis=0, keepdims=True)
    z = x - mean
    cor = z.T @ z
    no_diag = cor - jnp.diag(jnp.diag(cor))
    return jnp.sqrt(jnp.sum(no_diag * no_diag)) / x.shape[0]


if __name__ == "__main__":
    key = jax.random.PRNGKey(0)
    k1, k2, k3 = jax.random.split(key, 3)

    # Primary shape (descriptor batch): N=16, D=64 — single-block fast path.
    x = jax.random.normal(k1, (16, 64), dtype=jnp.float32)
    loss = jax.block_until_ready(correlation_penalty_loss(x))
    ref = jax.block_until_ready(_reference(x))
    assert jnp.allclose(loss, ref, rtol=1e-4, atol=1e-5), (loss, ref)

    # Ragged batch with a forced small tile: exercises the tiled accumulation
    # path and the masked partial last tile (tile_n override is for testing;
    # the default heuristic picks much larger tiles).
    x2 = jax.random.normal(k2, (20, 64), dtype=jnp.float32) + 0.5
    loss2 = jax.block_until_ready(correlation_penalty_loss(x2, tile_n=8))
    ref2 = jax.block_until_ready(_reference(x2))
    assert jnp.allclose(loss2, ref2, rtol=1e-4, atol=1e-5), (loss2, ref2)

    # bf16 input: MXU consumes bf16 operands, f32 accumulation (looser tol).
    x3 = jax.random.normal(k3, (16, 64), dtype=jnp.bfloat16)
    loss3 = jax.block_until_ready(correlation_penalty_loss(x3))
    ref3 = jax.block_until_ready(_reference(x3))
    assert jnp.allclose(loss3, ref3, rtol=5e-2, atol=1e-3), (loss3, ref3)

    print("KERNEL_OK")
</pallas_src>

<mosaic_0001>
module attributes {stable_mosaic.version = 11 : i64} {
  func.func @kernel(%arg0: i32, %arg1: memref<16x64xf32, #tpu.memory_space<vmem>>, %arg2: memref<1x1xf32, #tpu.memory_space<vmem>>, %arg3: memref<1x64xf32, #tpu.memory_space<vmem>>, %arg4: memref<64x64xf32, #tpu.memory_space<vmem>>) attributes {dimension_semantics = [#tpu.dimension_semantics<arbitrary>], iteration_bounds = array<i64: 1>, scalar_prefetch = 0 : i64, scratch_operands = 2 : i64, tpu.core_type = #tpu.core_type<tc>, window_params = [{transform_indices = @transform_0, window_bounds = array<i64: 16, 64>}, {pipeline_mode = #tpu.pipeline_mode<synchronous>, transform_indices = @transform_1, window_bounds = array<i64: 1, 1>}]} {
    %c0_i32 = arith.constant 0 : i32
    %0 = arith.cmpi eq, %arg0, %c0_i32 : i32
    %1 = arith.extui %0 : i1 to i32
    %c0_i32_0 = arith.constant 0 : i32
    %2 = arith.cmpi ne, %1, %c0_i32_0 : i32
    scf.if %2 {
      %cst_13 = arith.constant 0.000000e+00 : f32
      %16 = vector.broadcast %cst_13 : f32 to vector<1x64xf32>
      %c0_14 = arith.constant 0 : index
      %c0_15 = arith.constant 0 : index
      %17 = vector.load %arg3[%c0_14, %c0_15] : memref<1x64xf32, #tpu.memory_space<vmem>>, vector<1x64xf32>
      tpu.vector_store %arg3[%c0_14, %c0_15], %16 {strides = array<i32>} : memref<1x64xf32, #tpu.memory_space<vmem>>, vector<1x64xf32>,
      %cst_16 = arith.constant 0.000000e+00 : f32
      %18 = vector.broadcast %cst_16 : f32 to vector<64x64xf32>
      %c0_17 = arith.constant 0 : index
      %c0_18 = arith.constant 0 : index
      %19 = vector.load %arg4[%c0_17, %c0_18] : memref<64x64xf32, #tpu.memory_space<vmem>>, vector<64x64xf32>
      tpu.vector_store %arg4[%c0_17, %c0_18], %18 {strides = array<i32>} : memref<64x64xf32, #tpu.memory_space<vmem>>, vector<64x64xf32>,
    } else {
    }
    %c0 = arith.constant 0 : index
    %c0_1 = arith.constant 0 : index
    %3 = vector.load %arg1[%c0, %c0_1] : memref<16x64xf32, #tpu.memory_space<vmem>>, vector<16x64xf32>
    %c0_2 = arith.constant 0 : index
    %c0_3 = arith.constant 0 : index
    %4 = vector.load %arg3[%c0_2, %c0_3] : memref<1x64xf32, #tpu.memory_space<vmem>>, vector<1x64xf32>
    %cst = arith.constant dense<0.000000e+00> : vector<64xf32>
    %5 = vector.multi_reduction <add>, %3, %cst [0] : vector<16x64xf32> to vector<64xf32>
    %6 = vector.shape_cast %5 : vector<64xf32> to vector<1x64xf32>
    %7 = arith.addf %4, %6 : vector<1x64xf32>
    %c0_4 = arith.constant 0 : index
    %c0_5 = arith.constant 0 : index
    %8 = vector.load %arg3[%c0_4, %c0_5] : memref<1x64xf32, #tpu.memory_space<vmem>>, vector<1x64xf32>
    tpu.vector_store %arg3[%c0_4, %c0_5], %7 {strides = array<i32>} : memref<1x64xf32, #tpu.memory_space<vmem>>, vector<1x64xf32>,
    %c0_6 = arith.constant 0 : index
    %c0_7 = arith.constant 0 : index
    %9 = vector.load %arg4[%c0_6, %c0_7] : memref<64x64xf32, #tpu.memory_space<vmem>>, vector<64x64xf32>
    %cst_8 = arith.constant dense<0.000000e+00> : vector<64x64xf32>
    %10 = tpu.matmul %3, %3, %cst_8 {dimension_numbers = #tpu.dot_dimension_numbers<[0], [0], [1], [1], [0, 1, 1, 1], [], []>} : vector<16x64xf32>, vector<16x64xf32>, vector<64x64xf32> -> vector<64x64xf32>
    %11 = arith.addf %9, %10 : vector<64x64xf32>
    %c0_9 = arith.constant 0 : index
    %c0_10 = arith.constant 0 : index
    %12 = vector.load %arg4[%c0_9, %c0_10] : memref<64x64xf32, #tpu.memory_space<vmem>>, vector<64x64xf32>
    tpu.vector_store %arg4[%c0_9, %c0_10], %11 {strides = array<i32>} : memref<64x64xf32, #tpu.memory_space<vmem>>, vector<64x64xf32>,
    %c0_i32_11 = arith.constant 0 : i32
    %13 = arith.cmpi eq, %arg0, %c0_i32_11 : i32
    %14 = arith.extui %13 : i1 to i32
    %c0_i32_12 = arith.constant 0 : i32
    %15 = arith.cmpi ne, %14, %c0_i32_12 : i32
    scf.if %15 {
      %c0_13 = arith.constant 0 : index
      %c0_14 = arith.constant 0 : index
      %16 = vector.load %arg3[%c0_13, %c0_14] : memref<1x64xf32, #tpu.memory_space<vmem>>, vector<1x64xf32>
      %cst_15 = arith.constant dense<0.000000e+00> : vector<64x64xf32>
      %17 = tpu.matmul %16, %16, %cst_15 {dimension_numbers = #tpu.dot_dimension_numbers<[0], [0], [1], [1], [0, 1, 1, 1], [], []>} : vector<1x64xf32>, vector<1x64xf32>, vector<64x64xf32> -> vector<64x64xf32>
      %c0_16 = arith.constant 0 : index
      %c0_17 = arith.constant 0 : index
      %18 = vector.load %arg4[%c0_16, %c0_17] : memref<64x64xf32, #tpu.memory_space<vmem>>, vector<64x64xf32>
      %cst_18 = arith.constant 6.250000e-02 : f32
      %19 = vector.broadcast %cst_18 : f32 to vector<64x64xf32>
      %20 = arith.mulf %17, %19 : vector<64x64xf32>
      %21 = arith.subf %18, %20 : vector<64x64xf32>
      %22 = tpu.iota {dimensions = array<i32: 0>} : vector<64x64xi32>
      %23 = tpu.iota {dimensions = array<i32: 1>} : vector<64x64xi32>
      %24 = arith.cmpi eq, %22, %23 : vector<64x64xi32>
      %cst_19 = arith.constant 0.000000e+00 : f32
      %25 = vector.broadcast %cst_19 : f32 to vector<64x64xf32>
      %26 = arith.select %24, %25, %21 : vector<64x64xi1>, vector<64x64xf32>
      %27 = arith.mulf %26, %26 : vector<64x64xf32>
      %28 = vector.shape_cast %27 : vector<64x64xf32> to vector<1x64x64xf32>
      %cst_20 = arith.constant dense<0.000000e+00> : vector<1xf32>
      %29 = vector.multi_reduction <add>, %28, %cst_20 [1, 2] : vector<1x64x64xf32> to vector<1xf32>
      %30 = vector.shape_cast %29 : vector<1xf32> to vector<1x1x1xf32>
      %31 = vector.extract %30[0, 0, 0] : f32 from vector<1x1x1xf32>
      %32 = math.sqrt %31 : f32
      %cst_21 = arith.constant 6.250000e-02 : f32
      %33 = arith.mulf %32, %cst_21 : f32
      %34 = vector.broadcast %33 : f32 to vector<1x1xf32>
      %c0_22 = arith.constant 0 : index
      %c0_23 = arith.constant 0 : index
      %35 = vector.load %arg2[%c0_22, %c0_23] : memref<1x1xf32, #tpu.memory_space<vmem>>, vector<1x1xf32>
      tpu.vector_store %arg2[%c0_22, %c0_23], %34 {strides = array<i32>} : memref<1x1xf32, #tpu.memory_space<vmem>>, vector<1x1xf32>,
    } else {
    }
    return
  }
  func.func @transform_0(%arg0: i32) -> (i32, i32) {
    %c0_i32 = arith.constant 0 : i32
    %c0_i32_0 = arith.constant 0 : i32
    return %arg0, %c0_i32 : i32, i32
  }
  func.func @transform_1(%arg0: i32) -> (i32, i32) {
    %c0_i32 = arith.constant 0 : i32
    %c0_i32_0 = arith.constant 0 : i32
    %c0_i32_1 = arith.constant 0 : i32
    return %c0_i32, %c0_i32_0 : i32, i32
  }
}

</mosaic_0001>

<llo_original>
// kernel: tpu_custom_call.1
$region0: #{tpu_custom_call.1}
  #allocation0 [shape = 'u32[]', space=smem, size = 0x4, offset = 0x4, fixed_abs, tag = 'smem constant byte address 0x4 - core index']
  #allocation1 [shape = 'u32[144,128]{1,0:T(1,128)}', space=vmem, size = 0x12000, scoped, tag = 'internal scratch']
  #allocation2 [shape = 'f32[1,64]{1,0:T(1,128)}', space=vmem, size = 0x200, scoped, tag = 'scratch operand']
  #allocation3 [shape = 'f32[64,64]{1,0:T(8,128)}', space=vmem, size = 0x8000, scoped, tag = 'scratch operand']
  %s0 = inlined_call_operand.hbm [shape: f32[16,64], index: 0, kind: input, shape index: {}]
  %s1 = inlined_call_operand.hbm [shape: f32[1,1], index: 1, kind: output, shape index: {}]
  %s2 = sld [smem:[#allocation0]]
  $region26: #{tpu_custom_call.1} parent=0
    _
  %s4 = ssub.s32 1, %s2
  %s5 = scalar_select 0, %s4, %s2
  $region1: #{tpu_custom_call.1} parent=0
    #allocation4 [shape = 'u8[8192]{0}', space=vmem, size = 0x2000, scoped, tag = 'input window, operand 0, single buffered']
    #allocation5 [shape = 's32[1]{0}', space=sflag, size = 0x4, scoped, tag = 'scoped memory for tpu_custom_call.1']
    #allocation6 [shape = 's32[1]{0}', space=sflag, size = 0x4, scoped, tag = 'scoped memory for tpu_custom_call.1']
    #allocation7 [shape = 'u8[512]{0}', space=vmem, size = 0x400, scoped, tag = 'output window, operand 0, single buffered']
    %6 = vsyncpa [#allocation5], 0
    %7 = vsyncpa [#allocation6], 0
    // Predicated region
    $region2: #{tpu_custom_call.1} parent=1 // pred_check
      _
    $region3: #{tpu_custom_call.1} parent=1 // pred_check_branch
      %9 = sbr.rel (0) target = $region5
    $region4: #{tpu_custom_call.1} parent=1 // pred_region
      %s11 = ssub.s32 256, 256
      %12 = vsyncadd [#allocation5], %s11
      %s13 = sshll.u32 [#allocation4], 4
      %s14 = int_to_ptr.vmem [resolvable:$true] %s13
      %19 = dma.hbm_to_vmem [thread:$0]  %s0, 256, %s14, [#allocation5], 128, 128, 8
    $region5: #{tpu_custom_call.1} parent=1 // pred_fallthru
      _
    // Predicated region
    $region6: #{tpu_custom_call.1} parent=1 // pred_check
      _
    $region7: #{tpu_custom_call.1} parent=1 // pred_check_branch
      %21 = sbr.rel (0) target = $region9
    $region8: #{tpu_custom_call.1} parent=1 // pred_region
      %22 = dma.done [#allocation5], 256
    $region9: #{tpu_custom_call.1} parent=1 // pred_fallthru
      _
    %p23 = scmp.eq.s32.totalorder 0, 0
    // Predicated region
    $region10: #{tpu_custom_call.1} parent=1 // pred_check
      %p24 = pneg %p23
    $region11: #{tpu_custom_call.1} parent=1 // pred_check_branch
      %26 = sbr.rel (%p24) target = $region13
    $region12: #{tpu_custom_call.1} parent=1 // pred_region
      %vm27 = vcmask 516096
      %28 = vst.msk [vmem:[#allocation2] sm:$0x1] %vm27, 0.0
      %vm29 = vcmask 523264
      %30 = vst.msk [vmem:[#allocation3] sm:$0xff] %vm29, 0.0
      %31 = vst.msk [vmem:[#allocation3 + $0x8] sm:$0xff] %vm29, 0.0
      %32 = vst.msk [vmem:[#allocation3 + $0x10] sm:$0xff] %vm29, 0.0
      %33 = vst.msk [vmem:[#allocation3 + $0x18] sm:$0xff] %vm29, 0.0
      %34 = vst.msk [vmem:[#allocation3 + $0x20] sm:$0xff] %vm29, 0.0
      %35 = vst.msk [vmem:[#allocation3 + $0x28] sm:$0xff] %vm29, 0.0
      %36 = vst.msk [vmem:[#allocation3 + $0x30] sm:$0xff] %vm29, 0.0
      %37 = vst.msk [vmem:[#allocation3 + $0x38] sm:$0xff] %vm29, 0.0
    $region13: #{tpu_custom_call.1} parent=1 // pred_fallthru
      _
    %v38 = vld [vmem:[#allocation4] sm:$0xff]
    %v39 = vld [vmem:[#allocation4 + $0x8] sm:$0xff]
    %v40 = vld [vmem:[#allocation2] sm:$0x1]
    %vm41 = vcmask 523264
    %v42 = vsel %vm41, %v38, 0.0
    %v43 = vsel %vm41, %v39, 0.0
    %v44 = vadd.f32 %v42, %v43
    %v45 = vrot.slane %v44, 4
    %v46 = vadd.f32 %v44, %v45
    %v47 = vrot.slane %v46, 2
    %v48 = vadd.f32 %v46, %v47
    %v49 = vrot.slane %v48, 1
    %v50 = vadd.f32 %v48, %v49
    %v51 = vadd.f32 %v40, %v50
    %vm52 = vcmask 516096
    %53 = vst.msk [vmem:[#allocation2] sm:$0x1] %vm52, %v51
    %v54 = vld [vmem:[#allocation3] sm:$0xff]
    %v55 = vld [vmem:[#allocation3 + $0x8] sm:$0xff]
    %v56 = vld [vmem:[#allocation3 + $0x10] sm:$0xff]
    %v57 = vld [vmem:[#allocation3 + $0x18] sm:$0xff]
    %v58 = vld [vmem:[#allocation3 + $0x20] sm:$0xff]
    %v59 = vld [vmem:[#allocation3 + $0x28] sm:$0xff]
    %v60 = vld [vmem:[#allocation3 + $0x30] sm:$0xff]
    %v61 = vld [vmem:[#allocation3 + $0x38] sm:$0xff]
    %62 = vxpose.xlu0.b32.start [1/16] %v38, 128
    %63 = vxpose.xlu0.b32.cont [2/16] %v39, 128
    %64 = vxpose.xlu0.b32.cont [3/16] 0.0, 128
    %65 = vxpose.xlu0.b32.cont [4/16] 0.0, 128
    %66 = vxpose.xlu0.b32.cont [5/16] 0.0, 128
    %67 = vxpose.xlu0.b32.cont [6/16] 0.0, 128
    %68 = vxpose.xlu0.b32.cont [7/16] 0.0, 128
    %69 = vxpose.xlu0.b32.cont [8/16] 0.0, 128
    %70 = vxpose.xlu0.b32.cont [9/16] 0.0, 128
    %71 = vxpose.xlu0.b32.cont [10/16] 0.0, 128
    %72 = vxpose.xlu0.b32.cont [11/16] 0.0, 128
    %73 = vxpose.xlu0.b32.cont [12/16] 0.0, 128
    %74 = vxpose.xlu0.b32.cont [13/16] 0.0, 128
    %75 = vxpose.xlu0.b32.cont [14/16] 0.0, 128
    %76 = vxpose.xlu0.b32.cont [15/16] 0.0, 128
    %77 = vxpose.xlu0.b32.end [16/16] 0.0, 128
    %v78 = vpop.trf.xlu0
    %v79 = vpop.trf.xlu0
    %v80 = vpop.trf.xlu0
    %v81 = vpop.trf.xlu0
    %v82 = vpop.trf.xlu0
    %v83 = vpop.trf.xlu0
    %v84 = vpop.trf.xlu0
    %v85 = vpop.trf.xlu0
    %v86 = vpop.trf.xlu0
    %v87 = vpop.trf.xlu0
    %v88 = vpop.trf.xlu0
    %v89 = vpop.trf.xlu0
    %v90 = vpop.trf.xlu0
    %v91 = vpop.trf.xlu0
    %v92 = vpop.trf.xlu0
    %v93 = vpop.trf.xlu0
    %vm94 = vcmask 130048
    %v96 = vsel %vm94, %v78, 0
    %v99 = vsel %vm94, %v79, 0
    %v102 = vsel %vm94, %v80, 0
    %v105 = vsel %vm94, %v81, 0
    %v108 = vsel %vm94, %v82, 0
    %v111 = vsel %vm94, %v83, 0
    %v114 = vsel %vm94, %v84, 0
    %v117 = vsel %vm94, %v85, 0
    %119 = vmatprep.subr.mxu0 0.0
    %120 = vmatpush1.msra.mxu0 0.0
    %121 = vmatprep.subr.mxu0 0.0
    %122 = vmatpush1.msra.mxu0 0.0
    %123 = vmatprep.subr.mxu0 0.0
    %124 = vmatpush1.msra.mxu0 0.0
    %125 = vmatprep.subr.mxu0 0.0
    %126 = vmatpush1.msra.mxu0 0.0
    %127 = vmatprep.subr.mxu0 0.0
    %128 = vmatpush1.msra.mxu0 0.0
    %129 = vmatprep.subr.mxu0 0.0
    %130 = vmatpush1.msra.mxu0 0.0
    %131 = vmatprep.subr.mxu0 0.0
    %132 = vmatpush1.msra.mxu0 0.0
    %133 = vmatprep.subr.mxu0 0.0
    %134 = vmatpush1.msra.mxu0 0.0
    %135 = vmatprep.subr.mxu0 0.0
    %136 = vmatpush1.msra.mxu0 0.0
    %137 = vmatprep.subr.mxu0 0.0
    %138 = vmatpush1.msra.mxu0 0.0
    %139 = vmatprep.subr.mxu0 0.0
    %140 = vmatpush1.msra.mxu0 0.0
    %141 = vmatprep.subr.mxu0 0.0
    %142 = vmatpush1.msra.mxu0 0.0
    %143 = vmatprep.subr.mxu0 0.0
    %144 = vmatpush1.msra.mxu0 0.0
    %145 = vmatprep.subr.mxu0 0.0
    %146 = vmatpush1.msra.mxu0 0.0
    %147 = vmatprep.subr.mxu0 0.0
    %148 = vmatpush1.msra.mxu0 %v39
    %149 = vmatprep.subr.mxu0 0.0
    %150 = vmatpush1.msra.mxu0 %v38
    %151 = vmatprep.subr.mxu0 0.0
    %152 = vmatpush2.msra.mxu0 0.0
    %153 = vmatprep.subr.mxu0 0.0
    %154 = vmatpush2.msra.mxu0 0.0
    %155 = vmatprep.subr.mxu0 0.0
    %156 = vmatpush2.msra.mxu0 0.0
    %157 = vmatprep.subr.mxu0 0.0
    %158 = vmatpush2.msra.mxu0 0.0
    %159 = vmatprep.subr.mxu0 0.0
    %160 = vmatpush2.msra.mxu0 0.0
    %161 = vmatprep.subr.mxu0 0.0
    %162 = vmatpush2.msra.mxu0 0.0
    %163 = vmatprep.subr.mxu0 0.0
    %164 = vmatpush2.msra.mxu0 0.0
    %165 = vmatprep.subr.mxu0 0.0
    %166 = vmatpush2.msra.mxu0 0.0
    %167 = vmatprep.subr.mxu0 0.0
    %168 = vmatpush2.msra.mxu0 0.0
    %169 = vmatprep.subr.mxu0 0.0
    %170 = vmatpush2.msra.mxu0 0.0
    %171 = vmatprep.subr.mxu0 0.0
    %172 = vmatpush2.msra.mxu0 0.0
    %173 = vmatprep.subr.mxu0 0.0
    %174 = vmatpush2.msra.mxu0 0.0
    %175 = vmatprep.subr.mxu0 0.0
    %176 = vmatpush2.msra.mxu0 0.0
    %177 = vmatprep.subr.mxu0 0.0
    %178 = vmatpush2.msra.mxu0 0.0
    %179 = vmatprep.subr.mxu0 0.0
    %180 = vmatpush2.msra.mxu0 0.0
    %181 = vmatprep.subr.mxu0 0.0
    %182 = vmatpush2.msra.mxu0 0.0
    %183 = vmatprep.mubr.f32.mxu0 0.0
    %184 = vmatmul.mubr.f32.gmra.mxu0 %v96
    %v185 = vpop.f32.mrf.mxu0
    %v186 = vadd.f32 0.0, %v185
    %v187 = vpop.f32.mrf.mxu0
    %188 = vmatprep.mubr.f32.mxu0 0.0
    %189 = vmatmul.mubr.f32.gmra.mxu0 %v99
    %v190 = vpop.f32.mrf.mxu0
    %v191 = vadd.f32 0.0, %v190
    %v192 = vpop.f32.mrf.mxu0
    %193 = vmatprep.mubr.f32.mxu0 0.0
    %194 = vmatmul.mubr.f32.gmra.mxu0 %v102
    %v195 = vpop.f32.mrf.mxu0
    %v196 = vadd.f32 0.0, %v195
    %v197 = vpop.f32.mrf.mxu0
    %198 = vmatprep.mubr.f32.mxu0 0.0
    %199 = vmatmul.mubr.f32.gmra.mxu0 %v105
    %v200 = vpop.f32.mrf.mxu0
    %v201 = vadd.f32 0.0, %v200
    %v202 = vpop.f32.mrf.mxu0
    %203 = vmatprep.mubr.f32.mxu0 0.0
    %204 = vmatmul.mubr.f32.gmra.mxu0 %v108
    %v205 = vpop.f32.mrf.mxu0
    %v206 = vadd.f32 0.0, %v205
    %v207 = vpop.f32.mrf.mxu0
    %208 = vmatprep.mubr.f32.mxu0 0.0
    %209 = vmatmul.mubr.f32.gmra.mxu0 %v111
    %v210 = vpop.f32.mrf.mxu0
    %v211 = vadd.f32 0.0, %v210
    %v212 = vpop.f32.mrf.mxu0
    %213 = vmatprep.mubr.f32.mxu0 0.0
    %214 = vmatmul.mubr.f32.gmra.mxu0 %v114
    %v215 = vpop.f32.mrf.mxu0
    %v216 = vadd.f32 0.0, %v215
    %v217 = vpop.f32.mrf.mxu0
    %218 = vmatprep.mubr.f32.mxu0 0.0
    %219 = vmatmul.mubr.f32.gmra.mxu0 %v117
    %v220 = vpop.f32.mrf.mxu0
    %v221 = vadd.f32 0.0, %v220
    %v222 = vpop.f32.mrf.mxu0
    %223 = vdwg.mxu0
    %v224 = vadd.f32 %v54, %v186
    %v225 = vadd.f32 %v55, %v191
    %v226 = vadd.f32 %v56, %v196
    %v227 = vadd.f32 %v57, %v201
    %v228 = vadd.f32 %v58, %v206
    %v229 = vadd.f32 %v59, %v211
    %v230 = vadd.f32 %v60, %v216
    %v231 = vadd.f32 %v61, %v221
    %232 = vst.msk [vmem:[#allocation3] sm:$0xff] %vm41, %v224
    %233 = vst.msk [vmem:[#allocation3 + $0x8] sm:$0xff] %vm41, %v225
    %234 = vst.msk [vmem:[#allocation3 + $0x10] sm:$0xff] %vm41, %v226
    %235 = vst.msk [vmem:[#allocation3 + $0x18] sm:$0xff] %vm41, %v227
    %236 = vst.msk [vmem:[#allocation3 + $0x20] sm:$0xff] %vm41, %v228
    %237 = vst.msk [vmem:[#allocation3 + $0x28] sm:$0xff] %vm41, %v229
    %238 = vst.msk [vmem:[#allocation3 + $0x30] sm:$0xff] %vm41, %v230
    %239 = vst.msk [vmem:[#allocation3 + $0x38] sm:$0xff] %vm41, %v231
    // Predicated region
    $region14: #{tpu_custom_call.1} parent=1 // pred_check
      %p240 = pneg %p23
    $region15: #{tpu_custom_call.1} parent=1 // pred_check_branch
      %242 = sbr.rel (%p240) target = $region17
    $region16: #{tpu_custom_call.1} parent=1 // pred_region
      %v243 = vld [vmem:[#allocation2] sm:$0x1]
      %244 = vxpose.xlu0.b32.start [1/16] %v243, 128
      %245 = vxpose.xlu0.b32.cont [2/16] 0.0, 128
      %246 = vxpose.xlu0.b32.cont [3/16] 0.0, 128
      %247 = vxpose.xlu0.b32.cont [4/16] 0.0, 128
      %248 = vxpose.xlu0.b32.cont [5/16] 0.0, 128
      %249 = vxpose.xlu0.b32.cont [6/16] 0.0, 128
      %250 = vxpose.xlu0.b32.cont [7/16] 0.0, 128
      %251 = vxpose.xlu0.b32.cont [8/16] 0.0, 128
      %252 = vxpose.xlu0.b32.cont [9/16] 0.0, 128
      %253 = vxpose.xlu0.b32.cont [10/16] 0.0, 128
      %254 = vxpose.xlu0.b32.cont [11/16] 0.0, 128
      %255 = vxpose.xlu0.b32.cont [12/16] 0.0, 128
      %256 = vxpose.xlu0.b32.cont [13/16] 0.0, 128
      %257 = vxpose.xlu0.b32.cont [14/16] 0.0, 128
      %258 = vxpose.xlu0.b32.cont [15/16] 0.0, 128
      %259 = vxpose.xlu0.b32.end [16/16] 0.0, 128
      %v260 = vpop.trf.xlu0
      %v261 = vpop.trf.xlu0
      %v262 = vpop.trf.xlu0
      %v263 = vpop.trf.xlu0
      %v264 = vpop.trf.xlu0
      %v265 = vpop.trf.xlu0
      %v266 = vpop.trf.xlu0
      %v267 = vpop.trf.xlu0
      %v268 = vpop.trf.xlu0
      %v269 = vpop.trf.xlu0
      %v270 = vpop.trf.xlu0
      %v271 = vpop.trf.xlu0
      %v272 = vpop.trf.xlu0
      %v273 = vpop.trf.xlu0
      %v274 = vpop.trf.xlu0
      %v275 = vpop.trf.xlu0
      %vm276 = vcmask 7168
      %v278 = vsel %vm276, %v260, 0
      %v281 = vsel %vm276, %v261, 0
      %v284 = vsel %vm276, %v262, 0
      %v287 = vsel %vm276, %v263, 0
      %v290 = vsel %vm276, %v264, 0
      %v293 = vsel %vm276, %v265, 0
      %v296 = vsel %vm276, %v266, 0
      %v299 = vsel %vm276, %v267, 0
      %vm301 = vcmask 1040384
      %v303 = vsel %vm301, %v243, 0
      %305 = vmatprep.subr.mxu0 0.0
      %306 = vmatpush1.msra.mxu0 0.0
      %307 = vmatprep.subr.mxu0 0.0
      %308 = vmatpush1.msra.mxu0 0.0
      %309 = vmatprep.subr.mxu0 0.0
      %310 = vmatpush1.msra.mxu0 0.0
      %311 = vmatprep.subr.mxu0 0.0
      %312 = vmatpush1.msra.mxu0 0.0
      %313 = vmatprep.subr.mxu0 0.0
      %314 = vmatpush1.msra.mxu0 0.0
      %315 = vmatprep.subr.mxu0 0.0
      %316 = vmatpush1.msra.mxu0 0.0
      %317 = vmatprep.subr.mxu0 0.0
      %318 = vmatpush1.msra.mxu0 0.0
      %319 = vmatprep.subr.mxu0 0.0
      %320 = vmatpush1.msra.mxu0 0.0
      %321 = vmatprep.subr.mxu0 0.0
      %322 = vmatpush1.msra.mxu0 0.0
      %323 = vmatprep.subr.mxu0 0.0
      %324 = vmatpush1.msra.mxu0 0.0
      %325 = vmatprep.subr.mxu0 0.0
      %326 = vmatpush1.msra.mxu0 0.0
      %327 = vmatprep.subr.mxu0 0.0
      %328 = vmatpush1.msra.mxu0 0.0
      %329 = vmatprep.subr.mxu0 0.0
      %330 = vmatpush1.msra.mxu0 0.0
      %331 = vmatprep.subr.mxu0 0.0
      %332 = vmatpush1.msra.mxu0 0.0
      %333 = vmatprep.subr.mxu0 0.0
      %334 = vmatpush1.msra.mxu0 0.0
      %335 = vmatprep.subr.mxu0 0.0
      %336 = vmatpush1.msra.mxu0 %v303
      %337 = vmatprep.subr.mxu0 0.0
      %338 = vmatpush2.msra.mxu0 0.0
      %339 = vmatprep.subr.mxu0 0.0
      %340 = vmatpush2.msra.mxu0 0.0
      %341 = vmatprep.subr.mxu0 0.0
      %342 = vmatpush2.msra.mxu0 0.0
      %343 = vmatprep.subr.mxu0 0.0
      %344 = vmatpush2.msra.mxu0 0.0
      %345 = vmatprep.subr.mxu0 0.0
      %346 = vmatpush2.msra.mxu0 0.0
      %347 = vmatprep.subr.mxu0 0.0
      %348 = vmatpush2.msra.mxu0 0.0
      %349 = vmatprep.subr.mxu0 0.0
      %350 = vmatpush2.msra.mxu0 0.0
      %351 = vmatprep.subr.mxu0 0.0
      %352 = vmatpush2.msra.mxu0 0.0
      %353 = vmatprep.subr.mxu0 0.0
      %354 = vmatpush2.msra.mxu0 0.0
      %355 = vmatprep.subr.mxu0 0.0
      %356 = vmatpush2.msra.mxu0 0.0
      %357 = vmatprep.subr.mxu0 0.0
      %358 = vmatpush2.msra.mxu0 0.0
      %359 = vmatprep.subr.mxu0 0.0
      %360 = vmatpush2.msra.mxu0 0.0
      %361 = vmatprep.subr.mxu0 0.0
      %362 = vmatpush2.msra.mxu0 0.0
      %363 = vmatprep.subr.mxu0 0.0
      %364 = vmatpush2.msra.mxu0 0.0
      %365 = vmatprep.subr.mxu0 0.0
      %366 = vmatpush2.msra.mxu0 0.0
      %367 = vmatprep.subr.mxu0 0.0
      %368 = vmatpush2.msra.mxu0 0.0
      %369 = vmatprep.mubr.f32.mxu0 0.0
      %370 = vmatmul.mubr.f32.gmra.mxu0 %v278
      %v371 = vpop.f32.mrf.mxu0
      %v372 = vadd.f32 0.0, %v371
      %v373 = vpop.f32.mrf.mxu0
      %374 = vmatprep.mubr.f32.mxu0 0.0
      %375 = vmatmul.mubr.f32.gmra.mxu0 %v281
      %v376 = vpop.f32.mrf.mxu0
      %v377 = vadd.f32 0.0, %v376
      %v378 = vpop.f32.mrf.mxu0
      %379 = vmatprep.mubr.f32.mxu0 0.0
      %380 = vmatmul.mubr.f32.gmra.mxu0 %v284
      %v381 = vpop.f32.mrf.mxu0
      %v382 = vadd.f32 0.0, %v381
      %v383 = vpop.f32.mrf.mxu0
      %384 = vmatprep.mubr.f32.mxu0 0.0
      %385 = vmatmul.mubr.f32.gmra.mxu0 %v287
      %v386 = vpop.f32.mrf.mxu0
      %v387 = vadd.f32 0.0, %v386
      %v388 = vpop.f32.mrf.mxu0
      %389 = vmatprep.mubr.f32.mxu0 0.0
      %390 = vmatmul.mubr.f32.gmra.mxu0 %v290
      %v391 = vpop.f32.mrf.mxu0
      %v392 = vadd.f32 0.0, %v391
      %v393 = vpop.f32.mrf.mxu0
      %394 = vmatprep.mubr.f32.mxu0 0.0
      %395 = vmatmul.mubr.f32.gmra.mxu0 %v293
      %v396 = vpop.f32.mrf.mxu0
      %v397 = vadd.f32 0.0, %v396
      %v398 = vpop.f32.mrf.mxu0
      %399 = vmatprep.mubr.f32.mxu0 0.0
      %400 = vmatmul.mubr.f32.gmra.mxu0 %v296
      %v401 = vpop.f32.mrf.mxu0
      %v402 = vadd.f32 0.0, %v401
      %v403 = vpop.f32.mrf.mxu0
      %404 = vmatprep.mubr.f32.mxu0 0.0
      %405 = vmatmul.mubr.f32.gmra.mxu0 %v299
      %v406 = vpop.f32.mrf.mxu0
      %v407 = vadd.f32 0.0, %v406
      %v408 = vpop.f32.mrf.mxu0
      %409 = vdwg.mxu0
      %v410 = vld [vmem:[#allocation3] sm:$0xff]
      %v411 = vld [vmem:[#allocation3 + $0x8] sm:$0xff]
      %v412 = vld [vmem:[#allocation3 + $0x10] sm:$0xff]
      %v413 = vld [vmem:[#allocation3 + $0x18] sm:$0xff]
      %v414 = vld [vmem:[#allocation3 + $0x20] sm:$0xff]
      %v415 = vld [vmem:[#allocation3 + $0x28] sm:$0xff]
      %v416 = vld [vmem:[#allocation3 + $0x30] sm:$0xff]
      %v417 = vld [vmem:[#allocation3 + $0x38] sm:$0xff]
      %v418 = vmul.f32 %v372, 0.0625
      %v419 = vmul.f32 %v377, 0.0625
      %v420 = vmul.f32 %v382, 0.0625
      %v421 = vmul.f32 %v387, 0.0625
      %v422 = vmul.f32 %v392, 0.0625
      %v423 = vmul.f32 %v397, 0.0625
      %v424 = vmul.f32 %v402, 0.0625
      %v425 = vmul.f32 %v407, 0.0625
      %v426 = vsub.f32 %v410, %v418
      %v427 = vsub.f32 %v411, %v419
      %v428 = vsub.f32 %v412, %v420
      %v429 = vsub.f32 %v413, %v421
      %v430 = vsub.f32 %v414, %v422
      %v431 = vsub.f32 %v415, %v423
      %v432 = vsub.f32 %v416, %v424
      %v433 = vsub.f32 %v417, %v425
      %v434 = vlaneseq
      %v435 = vshrl.u32 %v434, 7
      %v436 = vadd.s32 %v435, 8
      %v437 = vadd.s32 %v435, 16
      %v438 = vadd.s32 %v435, 24
      %v439 = vadd.s32 %v435, 32
      %v440 = vadd.s32 %v435, 40
      %v441 = vadd.s32 %v435, 48
      %v442 = vadd.s32 %v435, 56
      %v443 = vlaneseq
      %v444 = vand.u32 %v443, 127
      %vm445 = vcmp.eq.s32.totalorder %v435, %v444
      %vm446 = vcmp.eq.s32.totalorder %v436, %v444
      %vm447 = vcmp.eq.s32.totalorder %v437, %v444
      %vm448 = vcmp.eq.s32.totalorder %v438, %v444
      %vm449 = vcmp.eq.s32.totalorder %v439, %v444
      %vm450 = vcmp.eq.s32.totalorder %v440, %v444
      %vm451 = vcmp.eq.s32.totalorder %v441, %v444
      %vm452 = vcmp.eq.s32.totalorder %v442, %v444
      %v453 = vsel %vm445, 0.0, %v426
      %v454 = vsel %vm446, 0.0, %v427
      %v455 = vsel %vm447, 0.0, %v428
      %v456 = vsel %vm448, 0.0, %v429
      %v457 = vsel %vm449, 0.0, %v430
      %v458 = vsel %vm450, 0.0, %v431
      %v459 = vsel %vm451, 0.0, %v432
      %v460 = vsel %vm452, 0.0, %v433
      %v461 = vmul.f32 %v453, %v453
      %v462 = vmul.f32 %v454, %v454
      %v463 = vmul.f32 %v455, %v455
      %v464 = vmul.f32 %v456, %v456
      %v465 = vmul.f32 %v457, %v457
      %v466 = vmul.f32 %v458, %v458
      %v467 = vmul.f32 %v459, %v459
      %v468 = vmul.f32 %v460, %v460
      %v469 = vsel %vm41, %v461, 0.0
      %v470 = vsel %vm41, %v462, 0.0
      %v471 = vadd.f32 %v469, %v470
      %v472 = vsel %vm41, %v463, 0.0
      %v473 = vadd.f32 %v471, %v472
      %v474 = vsel %vm41, %v464, 0.0
      %v475 = vadd.f32 %v473, %v474
      %v476 = vsel %vm41, %v465, 0.0
      %v477 = vadd.f32 %v475, %v476
      %v478 = vsel %vm41, %v466, 0.0
      %v479 = vadd.f32 %v477, %v478
      %v480 = vsel %vm41, %v467, 0.0
      %v481 = vadd.f32 %v479, %v480
      %v482 = vsel %vm41, %v468, 0.0
      %v483 = vadd.f32 %v481, %v482
      %484 = vadd.xlane.f32.xlu0 %v483
      %v485 = vpop.xlane.xlu0 %484
      %v486 = vrot.slane %v485, 4
      %v487 = vadd.f32 %v485, %v486
      %v488 = vrot.slane %v487, 2
      %v489 = vadd.f32 %v487, %v488
      %v490 = vrot.slane %v489, 1
      %v491 = vadd.f32 %v489, %v490
      %s492 = vtos %v491
      %v493 = vstv %s492
      %v494 = vrsqrt.pop %v493
      %v495 = vmul.f32 %v493, %v494
      %vm496 = vcmp.eq.f32.partialorder %v493, inf
      %v497 = vsel %vm496, %v493, %v495
      %vm498 = vcmp.eq.f32.partialorder %v493, 0.0
      %v499 = vand.u32 %v493, 2147483648
      %v500 = vsel %vm498, %v499, %v497
      %s501 = vtos %v500
      %s502 = smul.f32 %s501, 0.0625
      %v503 = vstv %s502
      %vm504 = vcmask 0
      %505 = vst.msk [vmem:[#allocation7] sm:$0x1] %vm504, %v503
    $region17: #{tpu_custom_call.1} parent=1 // pred_fallthru
      _
    // Predicated region
    $region18: #{tpu_custom_call.1} parent=1 // pred_check
      _
    $region19: #{tpu_custom_call.1} parent=1 // pred_check_branch
      %507 = sbr.rel (0) target = $region21
    $region20: #{tpu_custom_call.1} parent=1 // pred_region
      %s509 = ssub.s32 16, 16
      %510 = vsyncadd [#allocation6], %s509
      %s512 = sshll.u32 [#allocation7], 4
      %s513 = int_to_ptr.vmem [resolvable:$true] %s512
      %515 = dma.vmem_to_hbm [thread:$0]  %s513, 16, %s1, [#allocation6]
    $region21: #{tpu_custom_call.1} parent=1 // pred_fallthru
      _
    // Predicated region
    $region22: #{tpu_custom_call.1} parent=1 // pred_check
      _
    $region23: #{tpu_custom_call.1} parent=1 // pred_check_branch
      %517 = sbr.rel (0) target = $region25
    $region24: #{tpu_custom_call.1} parent=1 // pred_region
      %518 = dma.done [#allocation6], 16
    $region25: #{tpu_custom_call.1} parent=1 // pred_fallthru
      _
    %519 = vsyncpa [#allocation5], 1
    %520 = vsyncpa [#allocation6], 1

</llo_original>
